<compile_context>
chip_gen: v5e
topology: v5e:2x2
jax: 0.10.0
libtpu: 0.0.40
codegen_flags: <defaults>
</compile_context>

<pallas_src>
import functools

import jax
import jax.numpy as jnp
from jax import lax
from jax.experimental import pallas as pl
from jax.experimental.pallas import tpu as pltpu


# ---------------------------------------------------------------------------
# Kernels.  X tile (tm, td) is contracted with W tile (tv, td) on their last
# dims -> (tm, tv) on the MXU (no per-tile transpose / relayout).
# ---------------------------------------------------------------------------

def _tile_dot(x_ref, w_ref):
    return lax.dot_general(
        x_ref[...], w_ref[...],
        dimension_numbers=(((1,), (1,)), ((), ())),
        preferred_element_type=jnp.float32,
    )


def _kernel_single_k(x_ref, w_ref, o_ref):
    """Single reduction step: one dot, one store, no accumulator traffic."""
    o_ref[...] = _tile_dot(x_ref, w_ref).astype(o_ref.dtype)


def _kernel_f32_out(x_ref, w_ref, o_ref):
    """f32 output: accumulate directly into the resident output tile.

    The first K step stores the dot result directly, saving a full-tile
    zero-init write plus the read-back of zeros on the first '+='.
    """
    part = _tile_dot(x_ref, w_ref)
    k = pl.program_id(2)

    @pl.when(k == 0)
    def _():
        o_ref[...] = part

    @pl.when(k > 0)
    def _():
        o_ref[...] += part


def _kernel_acc_scratch(x_ref, w_ref, o_ref, acc_ref):
    """Narrow output dtypes: f32 scratch accumulator, cast on the last step."""
    part = _tile_dot(x_ref, w_ref)
    k = pl.program_id(2)

    @pl.when(k == 0)
    def _():
        acc_ref[...] = part

    @pl.when(k > 0)
    def _():
        acc_ref[...] += part

    @pl.when(k == pl.num_programs(2) - 1)
    def _():
        o_ref[...] = acc_ref[...].astype(o_ref.dtype)


# ---------------------------------------------------------------------------
# Tile selection helpers.
# ---------------------------------------------------------------------------

_ROW_TILE_CANDIDATES = (2048, 1536, 1024, 768, 512, 384, 256, 128)


def _pick_row_tile(n, cap):
    """Tile for a non-contraction (M or V) axis.

    Ragged last blocks are fine (masked loads/stores), so we only avoid
    *large* padded-compute waste: take the biggest candidate whose waste is
    <= ~6%, else the candidate minimizing waste.
    """
    if n <= cap:
        return n                              # single full-extent block
    cands = [c for c in _ROW_TILE_CANDIDATES if c <= cap]
    for c in cands:
        if ((-n) % c) * 16 <= n:
            return c
    return min(cands, key=lambda c: (((-n) % c), -c))


def _pick_td(d, cap=1024):
    """Contraction tile: multiple of 128 dividing D, or D itself when small."""
    if d <= cap:
        return d                              # single K step, full extent
    for c in range(cap, 0, -128):             # 1024, 896, ..., 128
        if d % c == 0:
            return c
    return cap                                # no clean divisor -> pad D only


def _vmem_capacity_bytes():
    try:
        info = pltpu.get_tpu_info()
        cap = getattr(info, "vmem_capacity_bytes", None)
        if cap:
            return int(cap)
    except Exception:
        pass
    return 64 << 20                           # conservative: v7x per-TC VMEM


# ---------------------------------------------------------------------------
# Public wrapper.
# ---------------------------------------------------------------------------

@functools.partial(jax.jit, static_argnames=("tm", "tv", "td", "compute_dtype"))
def embedding_transpose(inputs, weight, *, tm=None, tv=None, td=None,
                        compute_dtype=None):
    """inputs: (..., embed_dim), weight: (vocab, embed_dim) -> (..., vocab)."""
    *lead, d = inputs.shape
    v, d_w = weight.shape
    assert d == d_w, "inputs last dim must equal embedding dim"

    m = 1
    for s in lead:
        m *= s
    x2d = inputs.reshape(m, d)
    out_dtype = inputs.dtype

    # ---- generation-aware tile caps ------------------------------------
    vmem = _vmem_capacity_bytes()
    small_vmem = vmem < (100 << 20)       # v7x-like (64 MiB/TC, 2 TCs/chip)
    tm_cap = 2048
    tv_cap = 1024 if small_vmem else 2048
    vmem_limit = (56 << 20) if small_vmem else (96 << 20)

    if td is None:
        td = _pick_td(d, 1024)
    if tm is None:
        tm = _pick_row_tile(m, tm_cap)
    if tv is None:
        tv = _pick_row_tile(v, tv_cap)
        # v7x megacore: if M collapses to one block, keep >=2 V blocks so
        # both TensorCores get work under the "parallel" grid axes.
        if small_vmem and m <= tm and v > 256 and v <= tv:
            tv = (((v + 1) // 2) + 127) // 128 * 128

    m_blocks = pl.cdiv(m, tm)
    v_blocks = pl.cdiv(v, tv)

    # ---- compute dtype: stream bf16 when it cuts HBM traffic -----------
    if compute_dtype is None:
        if (x2d.dtype == jnp.float32 and weight.dtype == jnp.float32
                and (m_blocks > 1 or v_blocks > 1)):
            # Operands are re-streamed across output tiles; bf16 halves the
            # HBM bytes and matches the MXU's bf16-pass evaluation of f32
            # matmuls.  f32 accumulation is preserved inside the kernel.
            compute_dtype = jnp.bfloat16
        else:
            compute_dtype = jnp.result_type(x2d.dtype, weight.dtype)
    x2d = x2d.astype(compute_dtype)
    w2d = weight.astype(compute_dtype)

    # ---- pad ONLY the contraction axis if td does not divide D ---------
    # (Ragged M / V last blocks are masked by Pallas and never feed the
    #  contraction, so no padding and no output slice are needed there.)
    if d % td != 0:
        pad = (-d) % td
        x2d = jnp.pad(x2d, ((0, 0), (0, pad)))
        w2d = jnp.pad(w2d, ((0, 0), (0, pad)))
    pd = x2d.shape[1]
    k_blocks = pd // td

    grid = (m_blocks, v_blocks, k_blocks)

    if k_blocks == 1:
        kernel = _kernel_single_k
        scratch_shapes = []
    elif out_dtype == jnp.float32:
        kernel = _kernel_f32_out
        scratch_shapes = []
    else:
        kernel = _kernel_acc_scratch
        scratch_shapes = [pltpu.VMEM((tm, tv), jnp.float32)]

    # Advisory cost for XLA's scheduler: W is re-streamed once per M block,
    # X once per V block.
    in_itemsize = jnp.dtype(compute_dtype).itemsize
    cost = pl.CostEstimate(
        flops=2 * m * v * pd,
        transcendentals=0,
        bytes_accessed=(m * pd * in_itemsize * v_blocks
                        + v * pd * in_itemsize * m_blocks
                        + m * v * jnp.dtype(out_dtype).itemsize),
    )

    out2d = pl.pallas_call(
        kernel,
        out_shape=jax.ShapeDtypeStruct((m, v), out_dtype),
        grid_spec=pltpu.PrefetchScalarGridSpec(
            num_scalar_prefetch=0,
            grid=grid,
            in_specs=[
                pl.BlockSpec((tm, td), lambda i, j, k: (i, k)),  # X tile
                # If a profile ever shows exposed DMA at (i, j) boundaries,
                # add pipeline_mode=pl.Buffered(3) on the W spec below.
                pl.BlockSpec((tv, td), lambda i, j, k: (j, k)),  # W tile
            ],
            out_specs=pl.BlockSpec((tm, tv), lambda i, j, k: (i, j)),
            scratch_shapes=scratch_shapes,
        ),
        compiler_params=pltpu.CompilerParams(
            # M and V axes parallel (megacore / v7x TC sharding), K reduction
            # last and arbitrary.
            dimension_semantics=("parallel", "parallel", "arbitrary"),
            vmem_limit_bytes=vmem_limit,
        ),
        cost_estimate=cost,
    )(x2d, w2d)

    return out2d.reshape(*lead, v)


if __name__ == "__main__":
    # Small shapes consistent with the module: an nn.Embedding(vocab, hidden)
    # whose transpose projects hidden -> vocab logits.
    batch, seq, hidden, vocab = 2, 8, 32, 64

    key = jax.random.PRNGKey(0)
    k_x, k_w = jax.random.split(key)

    x = jax.random.normal(k_x, (batch, seq, hidden), dtype=jnp.float32)
    # Deterministic "embedding.weight" init (shape = (vocab, hidden)).
    weight = jax.random.normal(k_w, (vocab, hidden), dtype=jnp.float32) * 0.02

    out = embedding_transpose(x, weight)
    out = jax.block_until_ready(out)

    # Sanity check against plain JAX reference (same math as torch.matmul(x, W.T)).
    # Tolerance covers the MXU's bf16-pass evaluation of f32 matmuls and the
    # optional bf16 streaming path.
    ref = jnp.matmul(x, weight.T)
    assert out.shape == (batch, seq, vocab)
    assert jnp.allclose(out, ref, atol=2e-2, rtol=2e-2), float(
        jnp.max(jnp.abs(out - ref)))

    print("KERNEL_OK")
</pallas_src>

<mosaic_0001>
module attributes {stable_mosaic.version = 11 : i64} {
  func.func @_kernel_single_k(%arg0: i32, %arg1: i32, %arg2: i32, %arg3: memref<16x32xf32, #tpu.memory_space<vmem>>, %arg4: memref<64x32xf32, #tpu.memory_space<vmem>>, %arg5: memref<16x64xf32, #tpu.memory_space<vmem>>) attributes {dimension_semantics = [#tpu.dimension_semantics<parallel>, #tpu.dimension_semantics<parallel>, #tpu.dimension_semantics<arbitrary>], iteration_bounds = array<i64: 1, 1, 1>, scalar_prefetch = 0 : i64, scratch_operands = 0 : i64, tpu.core_type = #tpu.core_type<tc>, window_params = [{transform_indices = @transform_0, window_bounds = array<i64: 16, 32>}, {transform_indices = @transform_1, window_bounds = array<i64: 64, 32>}, {transform_indices = @transform_2, window_bounds = array<i64: 16, 64>}]} {
    %c0 = arith.constant 0 : index
    %c0_0 = arith.constant 0 : index
    %0 = vector.load %arg3[%c0, %c0_0] : memref<16x32xf32, #tpu.memory_space<vmem>>, vector<16x32xf32>
    %c0_1 = arith.constant 0 : index
    %c0_2 = arith.constant 0 : index
    %1 = vector.load %arg4[%c0_1, %c0_2] : memref<64x32xf32, #tpu.memory_space<vmem>>, vector<64x32xf32>
    %cst = arith.constant dense<0.000000e+00> : vector<16x64xf32>
    %2 = tpu.matmul %0, %1, %cst {dimension_numbers = #tpu.dot_dimension_numbers<[1], [1], [0], [0], [0, 0, 1, 0], [], []>} : vector<16x32xf32>, vector<64x32xf32>, vector<16x64xf32> -> vector<16x64xf32>
    %c0_3 = arith.constant 0 : index
    %c0_4 = arith.constant 0 : index
    %3 = vector.load %arg5[%c0_3, %c0_4] : memref<16x64xf32, #tpu.memory_space<vmem>>, vector<16x64xf32>
    tpu.vector_store %arg5[%c0_3, %c0_4], %2 {strides = array<i32>} : memref<16x64xf32, #tpu.memory_space<vmem>>, vector<16x64xf32>,
    return
  }
  func.func @transform_0(%arg0: i32, %arg1: i32, %arg2: i32) -> (i32, i32) {
    %c0_i32 = arith.constant 0 : i32
    return %arg0, %arg2 : i32, i32
  }
  func.func @transform_1(%arg0: i32, %arg1: i32, %arg2: i32) -> (i32, i32) {
    %c0_i32 = arith.constant 0 : i32
    return %arg1, %arg2 : i32, i32
  }
  func.func @transform_2(%arg0: i32, %arg1: i32, %arg2: i32) -> (i32, i32) {
    %c0_i32 = arith.constant 0 : i32
    return %arg0, %arg1 : i32, i32
  }
}

</mosaic_0001>

<llo_original>
// kernel: embedding_transpose.1
$region0: #{embedding_transpose.1}
  #allocation0 [shape = 'u32[]', space=smem, size = 0x4, offset = 0x4, fixed_abs, tag = 'smem constant byte address 0x4 - core index']
  #allocation1 [shape = 'u32[72,128]{1,0:T(1,128)}', space=vmem, size = 0x9000, scoped, tag = 'internal scratch']
  %s0 = inlined_call_operand.vmem [shape: f32[16,32], index: 0, kind: input, shape index: {}]
  %s1 = inlined_call_operand.vmem [shape: f32[64,32], index: 1, kind: input, shape index: {}]
  %s2 = inlined_call_operand.hbm [shape: f32[16,64], index: 2, kind: output, shape index: {}]
  %s3 = sld [smem:[#allocation0]]
  $region18: #{embedding_transpose.1} parent=0
    _
  %s5 = ssub.s32 1, %s3
  %s6 = scalar_select 0, %s5, %s3
  $region1: #{embedding_transpose.1} parent=0
    #allocation2 [shape = 'u8[8192]{0}', space=vmem, size = 0x2000, scoped, tag = 'output window, operand 0, single buffered']
    #allocation3 [shape = 's32[1]{0}', space=sflag, size = 0x4, scoped, tag = 'scoped memory for embedding_transpose.1']
    %7 = vsyncpa [#allocation3], 0
    // Predicated region
    $region2: #{embedding_transpose.1} parent=1 // pred_check
      _
    $region3: #{embedding_transpose.1} parent=1 // pred_check_branch
      %9 = sbr.rel (0) target = $region5
    $region4: #{embedding_transpose.1} parent=1 // pred_region
      _
    $region5: #{embedding_transpose.1} parent=1 // pred_fallthru
      _
    // Predicated region
    $region6: #{embedding_transpose.1} parent=1 // pred_check
      _
    $region7: #{embedding_transpose.1} parent=1 // pred_check_branch
      %11 = sbr.rel (0) target = $region9
    $region8: #{embedding_transpose.1} parent=1 // pred_region
      _
    $region9: #{embedding_transpose.1} parent=1 // pred_fallthru
      _
    %v12 = vld [vmem:[%s0] sm:$0xff]
    %v13 = vld [vmem:[%s0 + $0x8] sm:$0xff]
    %v14 = vld [vmem:[%s1] sm:$0xff]
    %v15 = vld [vmem:[%s1 + $0x8] sm:$0xff]
    %v16 = vld [vmem:[%s1 + $0x10] sm:$0xff]
    %v17 = vld [vmem:[%s1 + $0x18] sm:$0xff]
    %v18 = vld [vmem:[%s1 + $0x20] sm:$0xff]
    %v19 = vld [vmem:[%s1 + $0x28] sm:$0xff]
    %v20 = vld [vmem:[%s1 + $0x30] sm:$0xff]
    %v21 = vld [vmem:[%s1 + $0x38] sm:$0xff]
    %vm22 = vcmask 261120
    %v24 = vsel %vm22, %v12, 0
    %v27 = vsel %vm22, %v13, 0
    %v30 = vsel %vm22, %v14, 0
    %v33 = vsel %vm22, %v15, 0
    %v36 = vsel %vm22, %v16, 0
    %v39 = vsel %vm22, %v17, 0
    %v42 = vsel %vm22, %v18, 0
    %v45 = vsel %vm22, %v19, 0
    %v48 = vsel %vm22, %v20, 0
    %v51 = vsel %vm22, %v21, 0
    %53 = vmatpush.xpose.msra.mxu0 0.0
    %54 = vmatpush.xpose.msra.mxu0 0.0
    %55 = vmatpush.xpose.msra.mxu0 0.0
    %56 = vmatpush.xpose.msra.mxu0 0.0
    %57 = vmatpush.xpose.msra.mxu0 0.0
    %58 = vmatpush.xpose.msra.mxu0 0.0
    %59 = vmatpush.xpose.msra.mxu0 0.0
    %60 = vmatpush.xpose.msra.mxu0 0.0
    %61 = vmatpush.xpose.msra.mxu0 %v51
    %62 = vmatpush.xpose.msra.mxu0 %v48
    %63 = vmatpush.xpose.msra.mxu0 %v45
    %64 = vmatpush.xpose.msra.mxu0 %v42
    %65 = vmatpush.xpose.msra.mxu0 %v39
    %66 = vmatpush.xpose.msra.mxu0 %v36
    %67 = vmatpush.xpose.msra.mxu0 %v33
    %68 = vmatpush.xpose.msra.mxu0 %v30
    %69 = vmatmul.f32.gmra.mxu0 %v24
    %v70 = vpop.f32.mrf.mxu0
    %v71 = vadd.f32 0.0, %v70
    %72 = vmatmul.f32.gmra.mxu0 %v27
    %v73 = vpop.f32.mrf.mxu0
    %v74 = vadd.f32 0.0, %v73
    %75 = vdwg.mxu0
    %vm76 = vcmask 523264
    %77 = vst.msk [vmem:[#allocation2] sm:$0xff] %vm76, %v71
    %78 = vst.msk [vmem:[#allocation2 + $0x8] sm:$0xff] %vm76, %v74
    // Predicated region
    $region10: #{embedding_transpose.1} parent=1 // pred_check
      _
    $region11: #{embedding_transpose.1} parent=1 // pred_check_branch
      %80 = sbr.rel (0) target = $region13
    $region12: #{embedding_transpose.1} parent=1 // pred_region
      %82 = vsyncadd [#allocation3], 0
      %s83 = sshll.u32 [#allocation2], 4
      %s84 = int_to_ptr.vmem [resolvable:$true] %s83
      %s85 = sshll.u32 %s2, 4
      %s86 = int_to_ptr.hbm [resolvable:$true] %s85
      %91 = dma.vmem_to_hbm [thread:$0]  %s84, 256, %s86, [#allocation3], 128, 128, 8
    $region13: #{embedding_transpose.1} parent=1 // pred_fallthru
      _
    // Predicated region
    $region14: #{embedding_transpose.1} parent=1 // pred_check
      _
    $region15: #{embedding_transpose.1} parent=1 // pred_check_branch
      %93 = sbr.rel (0) target = $region17
    $region16: #{embedding_transpose.1} parent=1 // pred_region
      %95 = dma.done [#allocation3], 256
    $region17: #{embedding_transpose.1} parent=1 // pred_fallthru
      _
    %96 = vsyncpa [#allocation3], 1

</llo_original>
